<compile_context>
chip_gen: v7x
topology: tpu7x:2x2x1
jax: 0.10.0
libtpu: 0.0.40
codegen_flags: <defaults>
</compile_context>

<pallas_src>
import math
from functools import partial

import jax
import jax.numpy as jnp
import numpy as np
from jax.experimental import pallas as pl
from jax.experimental.pallas import tpu as pltpu


def _round_up(x, m):
    return (x + m - 1) // m * m


# ----------------------------------------------------------------------------
# Pallas kernel: fused STFT log-magnitude + per-bin loss partial sums
# ----------------------------------------------------------------------------
def _stft_loss_kernel(fr_ref, basis_ref, out_ref, *, t_pad, t_valid, bins_pad):
    # fr_ref:    (2*t_pad, k_pad)     [pred frames ; target frames], zero-padded
    # basis_ref: (k_pad, 2*bins_pad)  [win*cos | -win*sin], zero-padded
    # out_ref:   (3, bins_pad)        per-bin partial sums for this batch element
    spec = jnp.dot(fr_ref[...], basis_ref[...],
                   preferred_element_type=jnp.float32)       # (2*t_pad, 2*bins_pad)

    re = spec[:, :bins_pad]          # lane-aligned 128-wide slices
    im = spec[:, bins_pad:]

    # 0.5*log10(power + eps) == log10(|X| + ~1e-8) for |X| >> 1e-8
    # (one EUP op per element instead of sqrt + log10).
    mag = 0.5 * jnp.log10(re * re + im * im + 1e-16)

    mag_p = mag[:t_pad]              # sublane-aligned (t_pad is a multiple of 8)
    mag_t = mag[t_pad:]
    d = mag_p - mag_t                # exactly 0 on padded rows / padded bins

    # Mask padded (all-zero) frames out of the sum(T^2) term; padded bins are
    # dropped in the wrapper by slicing the per-bin output.
    row = jax.lax.broadcasted_iota(jnp.int32, (t_pad, bins_pad), 0)
    tsq = jnp.where(row < t_valid, mag_t * mag_t, 0.0)

    out_ref[...] = jnp.concatenate(
        [jnp.sum(jnp.abs(d), axis=0, keepdims=True),
         jnp.sum(d * d, axis=0, keepdims=True),
         jnp.sum(tsq, axis=0, keepdims=True)],
        axis=0)


def _stft_partial_sums(frames, basis, *, t_pad, t_valid, bins_pad):
    B, two_t, k_pad = frames.shape
    kern = partial(_stft_loss_kernel, t_pad=t_pad, t_valid=t_valid,
                   bins_pad=bins_pad)
    return pl.pallas_call(
        kern,
        out_shape=jax.ShapeDtypeStruct((B, 3, bins_pad), jnp.float32),
        grid_spec=pltpu.PrefetchScalarGridSpec(
            num_scalar_prefetch=0,
            grid=(B,),
            in_specs=[
                # leading batch dim squeezed out of the kernel ref
                pl.BlockSpec((None, two_t, k_pad), lambda b: (b, 0, 0)),
                # basis stays resident across the grid
                pl.BlockSpec((k_pad, 2 * bins_pad), lambda b: (0, 0)),
            ],
            out_specs=pl.BlockSpec((None, 3, bins_pad), lambda b: (b, 0, 0)),
        ),
        compiler_params=pltpu.CompilerParams(
            # independent per-batch output blocks -> megacore-shardable on v7x
            dimension_semantics=("parallel",)),
    )(frames, basis)


# ----------------------------------------------------------------------------
# Glue: framing (center=True, reflect pad) + padded fused DFT basis
# ----------------------------------------------------------------------------
def _fused_basis(n_fft):
    n_bins = n_fft // 2 + 1
    k_pad = _round_up(n_fft, 128)
    bins_pad = _round_up(n_bins, 128)
    n = np.arange(n_fft, dtype=np.float64)
    k = np.arange(n_bins, dtype=np.float64)
    ang = 2.0 * math.pi * np.outer(n, k) / n_fft
    win = 0.5 - 0.5 * np.cos(2.0 * math.pi * n / n_fft)   # periodic Hann (torch default)
    basis = np.zeros((k_pad, 2 * bins_pad), dtype=np.float32)
    basis[:n_fft, :n_bins] = win[:, None] * np.cos(ang)
    basis[:n_fft, bins_pad:bins_pad + n_bins] = -win[:, None] * np.sin(ang)
    return jnp.asarray(basis), n_bins, bins_pad, k_pad


def _frame(x, n_fft, hop):
    # x: (B, L) -> (B, 1 + L//hop, n_fft), reflect-padded (torch.stft center=True)
    B, L = x.shape
    pad = n_fft // 2
    xp = jnp.pad(x, ((0, 0), (pad, pad)), mode="reflect")
    n_frames = 1 + L // hop
    idx = jnp.arange(n_frames)[:, None] * hop + jnp.arange(n_fft)[None, :]
    return xp[:, idx]


class STFTMagLossPallas:
    def __init__(self, n_fft_cfg, fft_sizes=None, hop_ratio=0.25,
                 lambda_mag=0.3, lambda_sc=1.0, lambda_wave=0.0):
        self.hop_ratio = hop_ratio
        self.lambda_mag, self.lambda_sc, self.lambda_wave = lambda_mag, lambda_sc, lambda_wave
        self.fft_sizes = tuple(fft_sizes) if fft_sizes is not None \
            else (n_fft_cfg, n_fft_cfg * 2)
        self._bases = {n: _fused_basis(n) for n in self.fft_sizes}
        self._fwd = jax.jit(self._forward)   # both resolutions in one dispatch

    def _forward(self, pred_wave, target_wave):
        B, _ = pred_wave.shape
        mag_loss = jnp.float32(0.0)
        sc_loss = jnp.float32(0.0)
        for n_fft in self.fft_sizes:
            hop = int(n_fft * self.hop_ratio)
            basis, n_bins, bins_pad, k_pad = self._bases[n_fft]
            # TODO(synk): for long audio, build frames in-kernel from the
            # reflect-padded waveform (strided pl.ds reads) to avoid the 4x
            # framed-array HBM traffic per resolution.
            fp = _frame(pred_wave, n_fft, hop)     # (B, T, n_fft)
            ft = _frame(target_wave, n_fft, hop)
            T = fp.shape[1]
            t_pad = _round_up(T, 8)

            def _padf(f):
                return jnp.pad(f, ((0, 0), (0, t_pad - T), (0, k_pad - n_fft)))

            # stack pred/target along the frame (M) axis -> one fused matmul
            frames = jnp.concatenate([_padf(fp), _padf(ft)], axis=1)  # (B, 2*t_pad, k_pad)

            sums = _stft_partial_sums(frames, basis, t_pad=t_pad,
                                      t_valid=T, bins_pad=bins_pad)   # (B, 3, bins_pad)
            s = jnp.sum(sums[:, :, :n_bins], axis=(0, 2))  # [sum|d|, sum d^2, sum T^2]

            mag_loss = mag_loss + s[0] / (B * T * n_bins)       # F.l1_loss (mean)
            sc_loss = sc_loss + s[1] / (s[2] + 1e-8)            # spectral convergence
        total = self.lambda_mag * mag_loss + self.lambda_sc * sc_loss
        if self.lambda_wave > 0:
            total = total + self.lambda_wave * jnp.mean(jnp.abs(pred_wave - target_wave))
        return total

    def __call__(self, pred_wave, target_wave):
        return self._fwd(pred_wave, target_wave)


# ----------------------------------------------------------------------------
# Pure-JAX reference (spec-faithful: log10(|X| + 1e-8)) for sanity checking
# ----------------------------------------------------------------------------
def _ref_dft_mats(n_fft):
    n_bins = n_fft // 2 + 1
    n = np.arange(n_fft, dtype=np.float64)
    k = np.arange(n_bins, dtype=np.float64)
    ang = 2.0 * math.pi * np.outer(n, k) / n_fft
    win = 0.5 - 0.5 * np.cos(2.0 * math.pi * n / n_fft)
    cosm = (win[:, None] * np.cos(ang)).astype(np.float32)
    sinm = (-win[:, None] * np.sin(ang)).astype(np.float32)
    return jnp.asarray(cosm), jnp.asarray(sinm)


def _ref_loss(pred, tgt, fft_sizes, hop_ratio, lm, ls, lw):
    mag_loss, sc_loss = 0.0, 0.0
    for n_fft in fft_sizes:
        hop = int(n_fft * hop_ratio)
        cosm, sinm = _ref_dft_mats(n_fft)

        def mag(x):
            fr = _frame(x, n_fft, hop)
            re = jnp.einsum("btn,nk->btk", fr, cosm, precision=jax.lax.Precision.HIGHEST)
            im = jnp.einsum("btn,nk->btk", fr, sinm, precision=jax.lax.Precision.HIGHEST)
            return jnp.log10(jnp.sqrt(re * re + im * im) + 1e-8)

        P, T = mag(pred), mag(tgt)
        mag_loss += jnp.mean(jnp.abs(P - T))
        sc_loss += jnp.sum((P - T) ** 2) / (jnp.sum(T ** 2) + 1e-8)
    total = lm * mag_loss + ls * sc_loss
    if lw > 0:
        total += lw * jnp.mean(jnp.abs(pred - tgt))
    return total


if __name__ == "__main__":
    # cfg.n_fft = 64  ->  fft_sizes = (64, 128)
    N_FFT = 64
    B, L = 2, 256

    key = jax.random.PRNGKey(0)
    k1, k2 = jax.random.split(key)
    pred_wave = jax.random.normal(k1, (B, L), dtype=jnp.float32)
    target_wave = jax.random.normal(k2, (B, L), dtype=jnp.float32)

    loss_mod = STFTMagLossPallas(N_FFT)
    total = jax.block_until_ready(loss_mod(pred_wave, target_wave))

    ref = jax.block_until_ready(
        _ref_loss(pred_wave, target_wave, loss_mod.fft_sizes,
                  loss_mod.hop_ratio, loss_mod.lambda_mag,
                  loss_mod.lambda_sc, loss_mod.lambda_wave))

    np.testing.assert_allclose(np.asarray(total), np.asarray(ref), rtol=5e-2, atol=5e-3)
    print("KERNEL_OK")
</pallas_src>

<mosaic_0001>
module attributes {stable_mosaic.version = 11 : i64} {
  func.func @_stft_loss_kernel(%arg0: i32, %arg1: memref<1x32x128xf32, #tpu.memory_space<vmem>>, %arg2: memref<128x256xf32, #tpu.memory_space<vmem>>, %arg3: memref<1x3x128xf32, #tpu.memory_space<vmem>>) attributes {dimension_semantics = [#tpu.dimension_semantics<parallel>], iteration_bounds = array<i64: 2>, scalar_prefetch = 0 : i64, scratch_operands = 0 : i64, tpu.core_type = #tpu.core_type<tc>, window_params = [{transform_indices = @transform_0, window_bounds = array<i64: 1, 32, 128>}, {pipeline_mode = #tpu.pipeline_mode<synchronous>, transform_indices = @transform_1, window_bounds = array<i64: 128, 256>}, {transform_indices = @transform_2, window_bounds = array<i64: 1, 3, 128>}]} {
    %c0 = arith.constant 0 : index
    %c0_0 = arith.constant 0 : index
    %c0_1 = arith.constant 0 : index
    %0 = vector.load %arg1[%c0, %c0_0, %c0_1] : memref<1x32x128xf32, #tpu.memory_space<vmem>>, vector<1x32x128xf32>
    %1 = vector.shape_cast %0 : vector<1x32x128xf32> to vector<32x128xf32>
    %c0_2 = arith.constant 0 : index
    %c0_3 = arith.constant 0 : index
    %2 = vector.load %arg2[%c0_2, %c0_3] : memref<128x256xf32, #tpu.memory_space<vmem>>, vector<128x256xf32>
    %cst = arith.constant dense<0.000000e+00> : vector<32x256xf32>
    %3 = tpu.matmul %1, %2, %cst {dimension_numbers = #tpu.dot_dimension_numbers<[1], [0], [0], [1], [0, 0, 1, 1], [], []>} : vector<32x128xf32>, vector<128x256xf32>, vector<32x256xf32> -> vector<32x256xf32>
    %4 = vector.extract_strided_slice %3 {offsets = [0, 0], sizes = [32, 128], strides = [1, 1]} : vector<32x256xf32> to vector<32x128xf32>
    %5 = vector.extract_strided_slice %3 {offsets = [0, 128], sizes = [32, 128], strides = [1, 1]} : vector<32x256xf32> to vector<32x128xf32>
    %6 = arith.mulf %4, %4 : vector<32x128xf32>
    %7 = arith.mulf %5, %5 : vector<32x128xf32>
    %8 = arith.addf %6, %7 : vector<32x128xf32>
    %cst_4 = arith.constant 1.000000e-16 : f32
    %9 = vector.broadcast %cst_4 : f32 to vector<32x128xf32>
    %10 = arith.addf %8, %9 : vector<32x128xf32>
    %11 = math.log %10 : vector<32x128xf32>
    %cst_5 = arith.constant 0.434294492 : f32
    %12 = vector.broadcast %cst_5 : f32 to vector<32x128xf32>
    %13 = arith.mulf %11, %12 : vector<32x128xf32>
    %cst_6 = arith.constant 5.000000e-01 : f32
    %14 = vector.broadcast %cst_6 : f32 to vector<32x128xf32>
    %15 = arith.mulf %14, %13 : vector<32x128xf32>
    %16 = vector.extract_strided_slice %15 {offsets = [0, 0], sizes = [16, 128], strides = [1, 1]} : vector<32x128xf32> to vector<16x128xf32>
    %17 = vector.extract_strided_slice %15 {offsets = [16, 0], sizes = [16, 128], strides = [1, 1]} : vector<32x128xf32> to vector<16x128xf32>
    %18 = arith.subf %16, %17 : vector<16x128xf32>
    %19 = tpu.iota {dimensions = array<i32: 0>} : vector<16x128xi32>
    %c9_i32 = arith.constant 9 : i32
    %20 = vector.broadcast %c9_i32 : i32 to vector<16x128xi32>
    %21 = arith.cmpi slt, %19, %20 : vector<16x128xi32>
    %22 = arith.mulf %17, %17 : vector<16x128xf32>
    %cst_7 = arith.constant 0.000000e+00 : f32
    %23 = vector.broadcast %cst_7 : f32 to vector<16x128xf32>
    %24 = arith.select %21, %22, %23 : vector<16x128xi1>, vector<16x128xf32>
    %25 = math.absf %18 : vector<16x128xf32>
    %cst_8 = arith.constant dense<0.000000e+00> : vector<128xf32>
    %26 = vector.multi_reduction <add>, %25, %cst_8 [0] : vector<16x128xf32> to vector<128xf32>
    %27 = vector.shape_cast %26 : vector<128xf32> to vector<1x128xf32>
    %28 = arith.mulf %18, %18 : vector<16x128xf32>
    %cst_9 = arith.constant dense<0.000000e+00> : vector<128xf32>
    %29 = vector.multi_reduction <add>, %28, %cst_9 [0] : vector<16x128xf32> to vector<128xf32>
    %30 = vector.shape_cast %29 : vector<128xf32> to vector<1x128xf32>
    %cst_10 = arith.constant dense<0.000000e+00> : vector<128xf32>
    %31 = vector.multi_reduction <add>, %24, %cst_10 [0] : vector<16x128xf32> to vector<128xf32>
    %32 = vector.shape_cast %31 : vector<128xf32> to vector<1x128xf32>
    %33 = tpu.concatenate %27, %30, %32 in 0 : vector<1x128xf32>, vector<1x128xf32>, vector<1x128xf32> -> vector<3x128xf32>
    %c0_11 = arith.constant 0 : index
    %c0_12 = arith.constant 0 : index
    %c0_13 = arith.constant 0 : index
    %34 = vector.load %arg3[%c0_11, %c0_12, %c0_13] : memref<1x3x128xf32, #tpu.memory_space<vmem>>, vector<1x3x128xf32>
    %35 = vector.shape_cast %34 : vector<1x3x128xf32> to vector<3x128xf32>
    %36 = vector.shape_cast %33 : vector<3x128xf32> to vector<1x3x128xf32>
    tpu.vector_store %arg3[%c0_11, %c0_12, %c0_13], %36 {strides = array<i32>} : memref<1x3x128xf32, #tpu.memory_space<vmem>>, vector<1x3x128xf32>,
    return
  }
  func.func @transform_0(%arg0: i32) -> (i32, i32, i32) {
    %c0_i32 = arith.constant 0 : i32
    %c0_i32_0 = arith.constant 0 : i32
    %c0_i32_1 = arith.constant 0 : i32
    return %arg0, %c0_i32, %c0_i32_0 : i32, i32, i32
  }
  func.func @transform_1(%arg0: i32) -> (i32, i32) {
    %c0_i32 = arith.constant 0 : i32
    %c0_i32_0 = arith.constant 0 : i32
    %c0_i32_1 = arith.constant 0 : i32
    return %c0_i32, %c0_i32_0 : i32, i32
  }
  func.func @transform_2(%arg0: i32) -> (i32, i32, i32) {
    %c0_i32 = arith.constant 0 : i32
    %c0_i32_0 = arith.constant 0 : i32
    %c0_i32_1 = arith.constant 0 : i32
    return %arg0, %c0_i32, %c0_i32_0 : i32, i32, i32
  }
}

module attributes {stable_mosaic.version = 11 : i64} {
  func.func @_stft_loss_kernel(%arg0: i32, %arg1: memref<1x48x128xf32, #tpu.memory_space<vmem>>, %arg2: memref<128x256xf32, #tpu.memory_space<vmem>>, %arg3: memref<1x3x128xf32, #tpu.memory_space<vmem>>) attributes {dimension_semantics = [#tpu.dimension_semantics<parallel>], iteration_bounds = array<i64: 2>, scalar_prefetch = 0 : i64, scratch_operands = 0 : i64, tpu.core_type = #tpu.core_type<tc>, window_params = [{transform_indices = @transform_0, window_bounds = array<i64: 1, 48, 128>}, {pipeline_mode = #tpu.pipeline_mode<synchronous>, transform_indices = @transform_1, window_bounds = array<i64: 128, 256>}, {transform_indices = @transform_2, window_bounds = array<i64: 1, 3, 128>}]} {
    %c0 = arith.constant 0 : index
    %c0_0 = arith.constant 0 : index
    %c0_1 = arith.constant 0 : index
    %0 = vector.load %arg1[%c0, %c0_0, %c0_1] : memref<1x48x128xf32, #tpu.memory_space<vmem>>, vector<1x48x128xf32>
    %1 = vector.shape_cast %0 : vector<1x48x128xf32> to vector<48x128xf32>
    %c0_2 = arith.constant 0 : index
    %c0_3 = arith.constant 0 : index
    %2 = vector.load %arg2[%c0_2, %c0_3] : memref<128x256xf32, #tpu.memory_space<vmem>>, vector<128x256xf32>
    %cst = arith.constant dense<0.000000e+00> : vector<48x256xf32>
    %3 = tpu.matmul %1, %2, %cst {dimension_numbers = #tpu.dot_dimension_numbers<[1], [0], [0], [1], [0, 0, 1, 1], [], []>} : vector<48x128xf32>, vector<128x256xf32>, vector<48x256xf32> -> vector<48x256xf32>
    %4 = vector.extract_strided_slice %3 {offsets = [0, 0], sizes = [48, 128], strides = [1, 1]} : vector<48x256xf32> to vector<48x128xf32>
    %5 = vector.extract_strided_slice %3 {offsets = [0, 128], sizes = [48, 128], strides = [1, 1]} : vector<48x256xf32> to vector<48x128xf32>
    %6 = arith.mulf %4, %4 : vector<48x128xf32>
    %7 = arith.mulf %5, %5 : vector<48x128xf32>
    %8 = arith.addf %6, %7 : vector<48x128xf32>
    %cst_4 = arith.constant 1.000000e-16 : f32
    %9 = vector.broadcast %cst_4 : f32 to vector<48x128xf32>
    %10 = arith.addf %8, %9 : vector<48x128xf32>
    %11 = math.log %10 : vector<48x128xf32>
    %cst_5 = arith.constant 0.434294492 : f32
    %12 = vector.broadcast %cst_5 : f32 to vector<48x128xf32>
    %13 = arith.mulf %11, %12 : vector<48x128xf32>
    %cst_6 = arith.constant 5.000000e-01 : f32
    %14 = vector.broadcast %cst_6 : f32 to vector<48x128xf32>
    %15 = arith.mulf %14, %13 : vector<48x128xf32>
    %16 = vector.extract_strided_slice %15 {offsets = [0, 0], sizes = [24, 128], strides = [1, 1]} : vector<48x128xf32> to vector<24x128xf32>
    %17 = vector.extract_strided_slice %15 {offsets = [24, 0], sizes = [24, 128], strides = [1, 1]} : vector<48x128xf32> to vector<24x128xf32>
    %18 = arith.subf %16, %17 : vector<24x128xf32>
    %19 = tpu.iota {dimensions = array<i32: 0>} : vector<24x128xi32>
    %c17_i32 = arith.constant 17 : i32
    %20 = vector.broadcast %c17_i32 : i32 to vector<24x128xi32>
    %21 = arith.cmpi slt, %19, %20 : vector<24x128xi32>
    %22 = arith.mulf %17, %17 : vector<24x128xf32>
    %cst_7 = arith.constant 0.000000e+00 : f32
    %23 = vector.broadcast %cst_7 : f32 to vector<24x128xf32>
    %24 = arith.select %21, %22, %23 : vector<24x128xi1>, vector<24x128xf32>
    %25 = math.absf %18 : vector<24x128xf32>
    %cst_8 = arith.constant dense<0.000000e+00> : vector<128xf32>
    %26 = vector.multi_reduction <add>, %25, %cst_8 [0] : vector<24x128xf32> to vector<128xf32>
    %27 = vector.shape_cast %26 : vector<128xf32> to vector<1x128xf32>
    %28 = arith.mulf %18, %18 : vector<24x128xf32>
    %cst_9 = arith.constant dense<0.000000e+00> : vector<128xf32>
    %29 = vector.multi_reduction <add>, %28, %cst_9 [0] : vector<24x128xf32> to vector<128xf32>
    %30 = vector.shape_cast %29 : vector<128xf32> to vector<1x128xf32>
    %cst_10 = arith.constant dense<0.000000e+00> : vector<128xf32>
    %31 = vector.multi_reduction <add>, %24, %cst_10 [0] : vector<24x128xf32> to vector<128xf32>
    %32 = vector.shape_cast %31 : vector<128xf32> to vector<1x128xf32>
    %33 = tpu.concatenate %27, %30, %32 in 0 : vector<1x128xf32>, vector<1x128xf32>, vector<1x128xf32> -> vector<3x128xf32>
    %c0_11 = arith.constant 0 : index
    %c0_12 = arith.constant 0 : index
    %c0_13 = arith.constant 0 : index
    %34 = vector.load %arg3[%c0_11, %c0_12, %c0_13] : memref<1x3x128xf32, #tpu.memory_space<vmem>>, vector<1x3x128xf32>
    %35 = vector.shape_cast %34 : vector<1x3x128xf32> to vector<3x128xf32>
    %36 = vector.shape_cast %33 : vector<3x128xf32> to vector<1x3x128xf32>
    tpu.vector_store %arg3[%c0_11, %c0_12, %c0_13], %36 {strides = array<i32>} : memref<1x3x128xf32, #tpu.memory_space<vmem>>, vector<1x3x128xf32>,
    return
  }
  func.func @transform_0(%arg0: i32) -> (i32, i32, i32) {
    %c0_i32 = arith.constant 0 : i32
    %c0_i32_0 = arith.constant 0 : i32
    %c0_i32_1 = arith.constant 0 : i32
    return %arg0, %c0_i32, %c0_i32_0 : i32, i32, i32
  }
  func.func @transform_1(%arg0: i32) -> (i32, i32) {
    %c0_i32 = arith.constant 0 : i32
    %c0_i32_0 = arith.constant 0 : i32
    %c0_i32_1 = arith.constant 0 : i32
    return %c0_i32, %c0_i32_0 : i32, i32
  }
  func.func @transform_2(%arg0: i32) -> (i32, i32, i32) {
    %c0_i32 = arith.constant 0 : i32
    %c0_i32_0 = arith.constant 0 : i32
    %c0_i32_1 = arith.constant 0 : i32
    return %arg0, %c0_i32, %c0_i32_0 : i32, i32, i32
  }
}

</mosaic_0001>

<llo_original>
// kernel: _forward.3
$region0: #{_forward.3}
  #allocation0 [shape = 'u32[]', space=smem, size = 0x4, offset = 0x4, fixed_abs, tag = 'smem constant byte address 0x4 - core index']
  #allocation1 [shape = 'u32[144,128]{1,0:T(1,128)}', space=vmem, size = 0x12000, scoped, tag = 'internal scratch']
  %s0 = inlined_call_operand.vmem [shape: f32[2,32,128], index: 0, kind: input, shape index: {}]
  %s1 = inlined_call_operand.vmem [shape: f32[128,256], index: 1, kind: input, shape index: {}]
  %s2 = inlined_call_operand.vmem [shape: f32[2,3,128], index: 2, kind: output, shape index: {}]
  %s3 = sld [smem:[#allocation0]]
  $region41: #{_forward.3} parent=0
    _
  %s5 = ssub.s32 1, %s3
  %s6 = scalar_select 0, %s5, %s3
  loop: start=0, step=1, limit=4
  $region2: #{_forward.3} parent=0 // loop_pre_header
    _
  $region3: #{_forward.3} parent=0 // loop_header
    %s8 = sphi 0, %s12
    %p9 = scmp.ge.s32.totalorder %s8, 4
    %s18 = sphi 0, %s20
    %s21 = sphi 0, %s18
    %s22 = sphi 0, %s21
    %s38 = sphi 0, %s22
    %s42 = sphi 0, %s42
    %s44 = sphi 0, %s42
    %s45 = sphi 0, %s44
    %s59 = sphi 0, %s45
    %s65 = sphi 0, %s67
    %s68 = sphi 0, %s65
    %s69 = sphi 0, %s68
    %s85 = sphi 0, %s69
  $region4: #{_forward.3} parent=0 // loop_header_branch
    %11 = sbr.rel (%p9) target = $region8
  $region5: #{_forward.3} parent=0 // loop_body
    %s13 = ssub.s32 %s8, 1
    %s14 = ssub.s32 %s8, 2
    %s15 = sadd.s32 %s8, 1
    %s16 = ssub.s32 %s8, %s15
    %p17 = scmp.eq.s32.totalorder %s16, 0
    %s19 = sadd.s32 %s18, 1
    %s20 = scalar_select %p17, %s18, %s19
    %p23 = pneg %p17
    %p24 = scmp.eq.s32.totalorder %s8, 1
    %p25 = por %p23, %p24
    %p26 = scmp.ne.s32.totalorder %s18, %s21
    %p27 = scmp.eq.s32.totalorder %s8, 0
    %p28 = por %p26, %p27
    %p29 = scmp.ne.s32.totalorder %s18, %s21
    %p30 = scmp.eq.s32.totalorder %s13, 1
    %p31 = por %p29, %p30
    %p32 = scmp.ne.s32.totalorder %s21, %s22
    %p33 = scmp.eq.s32.totalorder %s13, 0
    %p34 = por %p32, %p33
    %p35 = scmp.ne.s32.totalorder %s21, %s22
    %p36 = scmp.eq.s32.totalorder %s14, 1
    %p37 = por %p35, %p36
    %p39 = scmp.ne.s32.totalorder %s22, %s38
    %p40 = scmp.eq.s32.totalorder %s14, 0
    %p41 = por %p39, %p40
    %s43 = sadd.s32 %s42, 1
    %p46 = scmp.eq.s32.totalorder %s8, 1
    %p47 = scmp.ne.s32.totalorder %s42, %s44
    %p48 = scmp.eq.s32.totalorder %s8, 0
    %p49 = por %p47, %p48
    %p50 = scmp.ne.s32.totalorder %s42, %s44
    %p51 = scmp.eq.s32.totalorder %s13, 1
    %p52 = por %p50, %p51
    %p53 = scmp.ne.s32.totalorder %s44, %s45
    %p54 = scmp.eq.s32.totalorder %s13, 0
    %p55 = por %p53, %p54
    %p56 = scmp.ne.s32.totalorder %s44, %s45
    %p57 = scmp.eq.s32.totalorder %s14, 1
    %p58 = por %p56, %p57
    %p60 = scmp.ne.s32.totalorder %s45, %s59
    %p61 = scmp.eq.s32.totalorder %s14, 0
    %p62 = por %p60, %p61
    %s63 = ssub.s32 %s8, %s15
    %p64 = scmp.eq.s32.totalorder %s63, 0
    %s66 = sadd.s32 %s65, 1
    %s67 = scalar_select %p64, %s65, %s66
    %p70 = pneg %p64
    %p71 = scmp.eq.s32.totalorder %s8, 1
    %p72 = por %p70, %p71
    %p73 = scmp.ne.s32.totalorder %s65, %s68
    %p74 = scmp.eq.s32.totalorder %s8, 0
    %p75 = por %p73, %p74
    %p76 = scmp.ne.s32.totalorder %s65, %s68
    %p77 = scmp.eq.s32.totalorder %s13, 1
    %p78 = por %p76, %p77
    %p79 = scmp.ne.s32.totalorder %s68, %s69
    %p80 = scmp.eq.s32.totalorder %s13, 0
    %p81 = por %p79, %p80
    %p82 = scmp.ne.s32.totalorder %s68, %s69
    %p83 = scmp.eq.s32.totalorder %s14, 1
    %p84 = por %p82, %p83
    %p86 = scmp.ne.s32.totalorder %s69, %s85
    %p87 = scmp.eq.s32.totalorder %s14, 0
    %p88 = por %p86, %p87
    %p89 = scmp.le.s32.totalorder 1, %s8
    %p90 = scmp.lt.s32.totalorder %s8, 3
    %p91 = pnand %p89, %p90
    %p92 = pneg %p91
    // Predicated region
    $region9: #{_forward.3} parent=5 // pred_check
      _
    $region10: #{_forward.3} parent=5 // pred_check_branch
      %94 = sbr.rel (%p91) target = $region12
    $region11: #{_forward.3} parent=5 // pred_region
      %s95 = ssub.s32 %s8, 1
      // Predicated region
      $region13: #{_forward.3} parent=11 // pred_check
        %p96 = pneg %p55
      $region14: #{_forward.3} parent=11 // pred_check_branch
        %98 = sbr.rel (%p96) target = $region16
      $region15: #{_forward.3} parent=11 // pred_region
        _
      $region16: #{_forward.3} parent=11 // pred_fallthru
        _
    $region12: #{_forward.3} parent=5 // pred_fallthru
      _
    %p99 = scmp.lt.s32.totalorder %s8, 2
    // Predicated region
    $region17: #{_forward.3} parent=5 // pred_check
      %p100 = pneg %p99
    $region18: #{_forward.3} parent=5 // pred_check_branch
      %102 = sbr.rel (%p100) target = $region20
    $region19: #{_forward.3} parent=5 // pred_region
      // Predicated region
      $region21: #{_forward.3} parent=19 // pred_check
        %p103 = pneg %p28
      $region22: #{_forward.3} parent=19 // pred_check_branch
        %105 = sbr.rel (%p103) target = $region24
      $region23: #{_forward.3} parent=19 // pred_region
        %p106 = scmp.lt.s32.totalorder %s8, 1
        %s107 = scalar_select %p106, %s8, 1
        %s108 = smul.addr %s107, 4
        %s109 = smul.addr %s108, 8
        %s110 = scalar_lea.vmem %s0, %s109
      $region24: #{_forward.3} parent=19 // pred_fallthru
        _
    $region20: #{_forward.3} parent=5 // pred_fallthru
      _
    %p111 = scmp.le.s32.totalorder 1, %s8
    %p112 = scmp.lt.s32.totalorder %s8, 3
    %p113 = pnand %p111, %p112
    %p114 = pneg %p113
    // Predicated region
    $region25: #{_forward.3} parent=5 // pred_check
      _
    $region26: #{_forward.3} parent=5 // pred_check_branch
      %116 = sbr.rel (%p113) target = $region28
    $region27: #{_forward.3} parent=5 // pred_region
      %s117 = ssub.s32 %s8, 1
      %p118 = scmp.lt.s32.totalorder %s13, 1
      %s119 = scalar_select %p118, %s13, 1
      %s120 = smul.addr %s119, 4
      %s121 = smul.addr %s120, 8
      %s122 = scalar_lea.vmem %s0, %s121
      %p123 = pneg %p34
      %p124 = pneg %p31
      %p125 = pneg %p55
      %p126 = pneg %p52
      %p127 = pneg %p81
      %p128 = pneg %p78
      %p129 = scmp.lt.s32.totalorder %s13, 1
      %s130 = scalar_select %p129, %s13, 1
      %s131 = smul.addr %s130, 4
      %s132 = scalar_lea.vmem %s2, %s131
      %p133 = scmp.lt.s32.totalorder %s13, 1
      %s134 = scalar_select %p133, %s13, 1
      %s135 = smul.addr %s134, 4
      %s136 = smul.addr %s135, 8
      %s137 = scalar_lea.vmem %s0, %s136
      %p138 = scmp.lt.s32.totalorder %s13, 1
      %s139 = scalar_select %p138, %s13, 1
      %s140 = smul.addr %s139, 4
      %s141 = scalar_lea.vmem %s2, %s140
      %v142 = vld [vmem:[%s137] sm:$0xff]
      %v143 = vld [vmem:[%s137 + $0x8] sm:$0xff]
      %v144 = vld [vmem:[%s137 + $0x10] sm:$0xff]
      %v145 = vld [vmem:[%s137 + $0x18] sm:$0xff]
      %v146 = vld [vmem:[%s1] sm:$0xff]
      %v147 = vld [vmem:[%s1 + $0x8] sm:$0xff]
      %v148 = vld [vmem:[%s1 + $0x10] sm:$0xff]
      %v149 = vld [vmem:[%s1 + $0x18] sm:$0xff]
      %v150 = vld [vmem:[%s1 + $0x20] sm:$0xff]
      %v151 = vld [vmem:[%s1 + $0x28] sm:$0xff]
      %v152 = vld [vmem:[%s1 + $0x30] sm:$0xff]
      %v153 = vld [vmem:[%s1 + $0x38] sm:$0xff]
      %v154 = vld [vmem:[%s1 + $0x40] sm:$0xff]
      %v155 = vld [vmem:[%s1 + $0x48] sm:$0xff]
      %v156 = vld [vmem:[%s1 + $0x50] sm:$0xff]
      %v157 = vld [vmem:[%s1 + $0x58] sm:$0xff]
      %v158 = vld [vmem:[%s1 + $0x60] sm:$0xff]
      %v159 = vld [vmem:[%s1 + $0x68] sm:$0xff]
      %v160 = vld [vmem:[%s1 + $0x70] sm:$0xff]
      %v161 = vld [vmem:[%s1 + $0x78] sm:$0xff]
      %v162 = vld [vmem:[%s1 + $0x80] sm:$0xff]
      %v163 = vld [vmem:[%s1 + $0x88] sm:$0xff]
      %v164 = vld [vmem:[%s1 + $0x90] sm:$0xff]
      %v165 = vld [vmem:[%s1 + $0x98] sm:$0xff]
      %v166 = vld [vmem:[%s1 + $0xa0] sm:$0xff]
      %v167 = vld [vmem:[%s1 + $0xa8] sm:$0xff]
      %v168 = vld [vmem:[%s1 + $0xb0] sm:$0xff]
      %v169 = vld [vmem:[%s1 + $0xb8] sm:$0xff]
      %v170 = vld [vmem:[%s1 + $0xc0] sm:$0xff]
      %v171 = vld [vmem:[%s1 + $0xc8] sm:$0xff]
      %v172 = vld [vmem:[%s1 + $0xd0] sm:$0xff]
      %v173 = vld [vmem:[%s1 + $0xd8] sm:$0xff]
      %v174 = vld [vmem:[%s1 + $0xe0] sm:$0xff]
      %v175 = vld [vmem:[%s1 + $0xe8] sm:$0xff]
      %v176 = vld [vmem:[%s1 + $0xf0] sm:$0xff]
      %v177 = vld [vmem:[%s1 + $0xf8] sm:$0xff]
      %178 = vmatprep.subr.mxu0 %v147
      %179 = vmatpush1.msra.mxu0 %v146
      %180 = vmatprep.subr.mxu0 %v149
      %181 = vmatpush1.msra.mxu0 %v148
      %182 = vmatprep.subr.mxu0 %v151
      %183 = vmatpush1.msra.mxu0 %v150
      %184 = vmatprep.subr.mxu0 %v153
      %185 = vmatpush1.msra.mxu0 %v152
      %186 = vmatprep.subr.mxu0 %v155
      %187 = vmatpush1.msra.mxu0 %v154
      %188 = vmatprep.subr.mxu0 %v157
      %189 = vmatpush1.msra.mxu0 %v156
      %190 = vmatprep.subr.mxu0 %v159
      %191 = vmatpush1.msra.mxu0 %v158
      %192 = vmatprep.subr.mxu0 %v161
      %193 = vmatpush1.msra.mxu0 %v160
      %194 = vmatprep.subr.mxu0 %v163
      %195 = vmatpush1.msra.mxu0 %v162
      %196 = vmatprep.subr.mxu0 %v165
      %197 = vmatpush1.msra.mxu0 %v164
      %198 = vmatprep.subr.mxu0 %v167
      %199 = vmatpush1.msra.mxu0 %v166
      %200 = vmatprep.subr.mxu0 %v169
      %201 = vmatpush1.msra.mxu0 %v168
      %202 = vmatprep.subr.mxu0 %v171
      %203 = vmatpush1.msra.mxu0 %v170
      %204 = vmatprep.subr.mxu0 %v173
      %205 = vmatpush1.msra.mxu0 %v172
      %206 = vmatprep.subr.mxu0 %v175
      %207 = vmatpush1.msra.mxu0 %v174
      %208 = vmatprep.subr.mxu0 %v177
      %209 = vmatpush1.msra.mxu0 %v176
      %210 = vmatprep.subr.mxu0 0.0
      %211 = vmatpush1.msra.mxu0 0.0
      %212 = vmatprep.subr.mxu0 0.0
      %213 = vmatpush1.msra.mxu0 0.0
      %214 = vmatprep.subr.mxu0 0.0
      %215 = vmatpush1.msra.mxu0 0.0
      %216 = vmatprep.subr.mxu0 0.0
      %217 = vmatpush1.msra.mxu0 0.0
      %218 = vmatprep.subr.mxu0 0.0
      %219 = vmatpush1.msra.mxu0 0.0
      %220 = vmatprep.subr.mxu0 0.0
      %221 = vmatpush1.msra.mxu0 0.0
      %222 = vmatprep.subr.mxu0 0.0
      %223 = vmatpush1.msra.mxu0 0.0
      %224 = vmatprep.subr.mxu0 0.0
      %225 = vmatpush1.msra.mxu0 0.0
      %226 = vmatprep.subr.mxu0 0.0
      %227 = vmatpush1.msra.mxu0 0.0
      %228 = vmatprep.subr.mxu0 0.0
      %229 = vmatpush1.msra.mxu0 0.0
      %230 = vmatprep.subr.mxu0 0.0
      %231 = vmatpush1.msra.mxu0 0.0
      %232 = vmatprep.subr.mxu0 0.0
      %233 = vmatpush1.msra.mxu0 0.0
      %234 = vmatprep.subr.mxu0 0.0
      %235 = vmatpush1.msra.mxu0 0.0
      %236 = vmatprep.subr.mxu0 0.0
      %237 = vmatpush1.msra.mxu0 0.0
      %238 = vmatprep.subr.mxu0 0.0
      %239 = vmatpush1.msra.mxu0 0.0
      %240 = vmatprep.subr.mxu0 0.0
      %241 = vmatpush1.msra.mxu0 0.0
      %242 = vmatprep.mubr.f32.mxu0 0.0
      %243 = vmatmul.mubr.f32.gmra.mrb[0].mxu0 %v142
      %v244 = vpop.f32.mrb[0].mxu0
      %v245 = vadd.f32 0.0, %v244
      %v246 = vpop.f32.mrb[0].mxu0
      %v247 = vadd.f32 0.0, %v246
      %248 = vmatprep.mubr.f32.mxu0 0.0
      %249 = vmatmul.mubr.f32.gmra.mrb[0].mxu0 %v143
      %v250 = vpop.f32.mrb[0].mxu0
      %v251 = vadd.f32 0.0, %v250
      %v252 = vpop.f32.mrb[0].mxu0
      %v253 = vadd.f32 0.0, %v252
      %254 = vmatprep.mubr.f32.mxu0 0.0
      %255 = vmatmul.mubr.f32.gmra.mrb[0].mxu0 %v144
      %v256 = vpop.f32.mrb[0].mxu0
      %v257 = vadd.f32 0.0, %v256
      %v258 = vpop.f32.mrb[0].mxu0
      %v259 = vadd.f32 0.0, %v258
      %260 = vmatprep.mubr.f32.mxu0 0.0
      %261 = vmatmul.mubr.f32.gmra.mrb[0].mxu0 %v145
      %v262 = vpop.f32.mrb[0].mxu0
      %v263 = vadd.f32 0.0, %v262
      %v264 = vpop.f32.mrb[0].mxu0
      %v265 = vadd.f32 0.0, %v264
      %266 = vdwg.mxu0
      %v267 = vmul.f32 %v245, %v245
      %v268 = vmul.f32 %v251, %v251
      %v269 = vmul.f32 %v257, %v257
      %v270 = vmul.f32 %v263, %v263
      %v271 = vmul.f32 %v247, %v247
      %v272 = vmul.f32 %v253, %v253
      %v273 = vmul.f32 %v259, %v259
      %v274 = vmul.f32 %v265, %v265
      %v275 = vadd.f32 %v267, %v271
      %v276 = vadd.f32 %v268, %v272
      %v277 = vadd.f32 %v269, %v273
      %v278 = vadd.f32 %v270, %v274
      %v279 = vadd.f32 %v275, 1e-16
      %v280 = vadd.f32 %v276, 1e-16
      %v281 = vadd.f32 %v277, 1e-16
      %v282 = vadd.f32 %v278, 1e-16
      %v283 = vlog2.pop %v279
      %v284 = vmul.f32 %v283, 0.6931472
      %v285 = vlog2.pop %v280
      %v286 = vmul.f32 %v285, 0.6931472
      %v287 = vlog2.pop %v281
      %v288 = vmul.f32 %v287, 0.6931472
      %v289 = vlog2.pop %v282
      %v290 = vmul.f32 %v289, 0.6931472
      %v291 = vmul.f32 %v284, 0.4342945
      %v292 = vmul.f32 %v286, 0.4342945
      %v293 = vmul.f32 %v288, 0.4342945
      %v294 = vmul.f32 %v290, 0.4342945
      %v295 = vmul.f32 %v291, 0.5
      %v296 = vmul.f32 %v292, 0.5
      %v297 = vmul.f32 %v293, 0.5
      %v298 = vmul.f32 %v294, 0.5
      %v299 = vsub.f32 %v295, %v297
      %v300 = vsub.f32 %v296, %v298
      %v301 = vlaneseq
      %v302 = vshrl.u32 %v301, 7
      %v303 = vadd.s32 %v302, 8
      %vm304 = vcmp.lt.s32.totalorder %v302, 9
      %vm305 = vcmp.lt.s32.totalorder %v303, 9
      %v306 = vmul.f32 %v297, %v297
      %v307 = vmul.f32 %v298, %v298
      %v308 = vsel %vm304, %v306, 0.0
      %v309 = vsel %vm305, %v307, 0.0
      %v310 = vand.u32 2147483647, %v299
      %v311 = vand.u32 2147483647, %v300
      %v312 = vadd.f32 %v310, %v311
      %v313 = vrot.slane %v312, 4
      %v314 = vadd.f32 %v312, %v313
      %v315 = vrot.slane %v314, 2
      %v316 = vadd.f32 %v314, %v315
      %v317 = vrot.slane %v316, 1
      %v318 = vadd.f32 %v316, %v317
      %v319 = vmul.f32 %v299, %v299
      %v320 = vmul.f32 %v300, %v300
      %v321 = vadd.f32 %v319, %v320
      %v322 = vrot.slane %v321, 4
      %v323 = vadd.f32 %v321, %v322
      %v324 = vrot.slane %v323, 2
      %v325 = vadd.f32 %v323, %v324
      %v326 = vrot.slane %v325, 1
      %v327 = vadd.f32 %v325, %v326
      %v328 = vadd.f32 %v308, %v309
      %v329 = vrot.slane %v328, 4
      %v330 = vadd.f32 %v328, %v329
      %v331 = vrot.slane %v330, 2
      %v332 = vadd.f32 %v330, %v331
      %v333 = vrot.slane %v332, 1
      %v334 = vadd.f32 %v332, %v333
      %vm335 = vcmask 1040384
      %v336 = vsel %vm335, %v318, %v327
      %vm337 = vcmask 1041408
      %v338 = vsel %vm337, %v336, %v334
      %339 = vst [vmem:[%s141] sm:$0x7] %v338
      %p340 = scmp.lt.s32.totalorder %s13, 1
      %s341 = scalar_select %p340, %s13, 1
      %s342 = smul.addr %s341, 4
      %s343 = scalar_lea.vmem %s2, %s342
      // Predicated region
      $region29: #{_forward.3} parent=27 // pred_check
        %p344 = pneg %p78
      $region30: #{_forward.3} parent=27 // pred_check_branch
        %346 = sbr.rel (%p344) target = $region32
      $region31: #{_forward.3} parent=27 // pred_region
        _
      $region32: #{_forward.3} parent=27 // pred_fallthru
        _
    $region28: #{_forward.3} parent=5 // pred_fallthru
      _
    %p347 = scmp.le.s32.totalorder 2, %s8
    // Predicated region
    $region33: #{_forward.3} parent=5 // pred_check
      %p348 = pneg %p347
    $region34: #{_forward.3} parent=5 // pred_check_branch
      %350 = sbr.rel (%p348) target = $region36
    $region35: #{_forward.3} parent=5 // pred_region
      %s351 = ssub.s32 %s8, 2
      // Predicated region
      $region37: #{_forward.3} parent=35 // pred_check
        %p352 = pneg %p84
      $region38: #{_forward.3} parent=35 // pred_check_branch
        %354 = sbr.rel (%p352) target = $region40
      $region39: #{_forward.3} parent=35 // pred_region
        %p355 = scmp.lt.s32.totalorder %s14, 1
        %s356 = scalar_select %p355, %s14, 1
        %s357 = smul.addr %s356, 4
        %s358 = scalar_lea.vmem %s2, %s357
      $region40: #{_forward.3} parent=35 // pred_fallthru
        _
    $region36: #{_forward.3} parent=5 // pred_fallthru
      _
  $region6: #{_forward.3} parent=0 // loop_footer
    %s12 = sadd.s32 1, %s8
  $region7: #{_forward.3} parent=0 // loop_footer_branch
    %7 = sbr.rel target = $region3
  $region8: #{_forward.3} parent=0 // loop_exit
    _

// kernel: _forward.2
$region0: #{_forward.2}
  #allocation0 [shape = 'u32[]', space=smem, size = 0x4, offset = 0x4, fixed_abs, tag = 'smem constant byte address 0x4 - core index']
  #allocation1 [shape = 'u32[144,128]{1,0:T(1,128)}', space=vmem, size = 0x12000, scoped, tag = 'internal scratch']
  %s0 = inlined_call_operand.vmem [shape: f32[2,48,128], index: 0, kind: input, shape index: {}]
  %s1 = inlined_call_operand.vmem [shape: f32[128,256], index: 1, kind: input, shape index: {}]
  %s2 = inlined_call_operand.vmem [shape: f32[2,3,128], index: 2, kind: output, shape index: {}]
  %s3 = sld [smem:[#allocation0]]
  $region41: #{_forward.2} parent=0
    _
  %s5 = ssub.s32 1, %s3
  %s6 = scalar_select 0, %s5, %s3
  loop: start=0, step=1, limit=4
  $region2: #{_forward.2} parent=0 // loop_pre_header
    _
  $region3: #{_forward.2} parent=0 // loop_header
    %s8 = sphi 0, %s12
    %p9 = scmp.ge.s32.totalorder %s8, 4
    %s18 = sphi 0, %s20
    %s21 = sphi 0, %s18
    %s22 = sphi 0, %s21
    %s38 = sphi 0, %s22
    %s42 = sphi 0, %s42
    %s44 = sphi 0, %s42
    %s45 = sphi 0, %s44
    %s59 = sphi 0, %s45
    %s65 = sphi 0, %s67
    %s68 = sphi 0, %s65
    %s69 = sphi 0, %s68
    %s85 = sphi 0, %s69
  $region4: #{_forward.2} parent=0 // loop_header_branch
    %11 = sbr.rel (%p9) target = $region8
  $region5: #{_forward.2} parent=0 // loop_body
    %s13 = ssub.s32 %s8, 1
    %s14 = ssub.s32 %s8, 2
    %s15 = sadd.s32 %s8, 1
    %s16 = ssub.s32 %s8, %s15
    %p17 = scmp.eq.s32.totalorder %s16, 0
    %s19 = sadd.s32 %s18, 1
    %s20 = scalar_select %p17, %s18, %s19
    %p23 = pneg %p17
    %p24 = scmp.eq.s32.totalorder %s8, 1
    %p25 = por %p23, %p24
    %p26 = scmp.ne.s32.totalorder %s18, %s21
    %p27 = scmp.eq.s32.totalorder %s8, 0
    %p28 = por %p26, %p27
    %p29 = scmp.ne.s32.totalorder %s18, %s21
    %p30 = scmp.eq.s32.totalorder %s13, 1
    %p31 = por %p29, %p30
    %p32 = scmp.ne.s32.totalorder %s21, %s22
    %p33 = scmp.eq.s32.totalorder %s13, 0
    %p34 = por %p32, %p33
    %p35 = scmp.ne.s32.totalorder %s21, %s22
    %p36 = scmp.eq.s32.totalorder %s14, 1
    %p37 = por %p35, %p36
    %p39 = scmp.ne.s32.totalorder %s22, %s38
    %p40 = scmp.eq.s32.totalorder %s14, 0
    %p41 = por %p39, %p40
    %s43 = sadd.s32 %s42, 1
    %p46 = scmp.eq.s32.totalorder %s8, 1
    %p47 = scmp.ne.s32.totalorder %s42, %s44
    %p48 = scmp.eq.s32.totalorder %s8, 0
    %p49 = por %p47, %p48
    %p50 = scmp.ne.s32.totalorder %s42, %s44
    %p51 = scmp.eq.s32.totalorder %s13, 1
    %p52 = por %p50, %p51
    %p53 = scmp.ne.s32.totalorder %s44, %s45
    %p54 = scmp.eq.s32.totalorder %s13, 0
    %p55 = por %p53, %p54
    %p56 = scmp.ne.s32.totalorder %s44, %s45
    %p57 = scmp.eq.s32.totalorder %s14, 1
    %p58 = por %p56, %p57
    %p60 = scmp.ne.s32.totalorder %s45, %s59
    %p61 = scmp.eq.s32.totalorder %s14, 0
    %p62 = por %p60, %p61
    %s63 = ssub.s32 %s8, %s15
    %p64 = scmp.eq.s32.totalorder %s63, 0
    %s66 = sadd.s32 %s65, 1
    %s67 = scalar_select %p64, %s65, %s66
    %p70 = pneg %p64
    %p71 = scmp.eq.s32.totalorder %s8, 1
    %p72 = por %p70, %p71
    %p73 = scmp.ne.s32.totalorder %s65, %s68
    %p74 = scmp.eq.s32.totalorder %s8, 0
    %p75 = por %p73, %p74
    %p76 = scmp.ne.s32.totalorder %s65, %s68
    %p77 = scmp.eq.s32.totalorder %s13, 1
    %p78 = por %p76, %p77
    %p79 = scmp.ne.s32.totalorder %s68, %s69
    %p80 = scmp.eq.s32.totalorder %s13, 0
    %p81 = por %p79, %p80
    %p82 = scmp.ne.s32.totalorder %s68, %s69
    %p83 = scmp.eq.s32.totalorder %s14, 1
    %p84 = por %p82, %p83
    %p86 = scmp.ne.s32.totalorder %s69, %s85
    %p87 = scmp.eq.s32.totalorder %s14, 0
    %p88 = por %p86, %p87
    %p89 = scmp.le.s32.totalorder 1, %s8
    %p90 = scmp.lt.s32.totalorder %s8, 3
    %p91 = pnand %p89, %p90
    %p92 = pneg %p91
    // Predicated region
    $region9: #{_forward.2} parent=5 // pred_check
      _
    $region10: #{_forward.2} parent=5 // pred_check_branch
      %94 = sbr.rel (%p91) target = $region12
    $region11: #{_forward.2} parent=5 // pred_region
      %s95 = ssub.s32 %s8, 1
      // Predicated region
      $region13: #{_forward.2} parent=11 // pred_check
        %p96 = pneg %p55
      $region14: #{_forward.2} parent=11 // pred_check_branch
        %98 = sbr.rel (%p96) target = $region16
      $region15: #{_forward.2} parent=11 // pred_region
        _
      $region16: #{_forward.2} parent=11 // pred_fallthru
        _
    $region12: #{_forward.2} parent=5 // pred_fallthru
      _
    %p99 = scmp.lt.s32.totalorder %s8, 2
    // Predicated region
    $region17: #{_forward.2} parent=5 // pred_check
      %p100 = pneg %p99
    $region18: #{_forward.2} parent=5 // pred_check_branch
      %102 = sbr.rel (%p100) target = $region20
    $region19: #{_forward.2} parent=5 // pred_region
      // Predicated region
      $region21: #{_forward.2} parent=19 // pred_check
        %p103 = pneg %p28
      $region22: #{_forward.2} parent=19 // pred_check_branch
        %105 = sbr.rel (%p103) target = $region24
      $region23: #{_forward.2} parent=19 // pred_region
        %p106 = scmp.lt.s32.totalorder %s8, 1
        %s107 = scalar_select %p106, %s8, 1
        %s108 = smul.addr %s107, 6
        %s109 = smul.addr %s108, 8
        %s110 = scalar_lea.vmem %s0, %s109
      $region24: #{_forward.2} parent=19 // pred_fallthru
        _
    $region20: #{_forward.2} parent=5 // pred_fallthru
      _
    %p111 = scmp.le.s32.totalorder 1, %s8
    %p112 = scmp.lt.s32.totalorder %s8, 3
    %p113 = pnand %p111, %p112
    %p114 = pneg %p113
    // Predicated region
    $region25: #{_forward.2} parent=5 // pred_check
      _
    $region26: #{_forward.2} parent=5 // pred_check_branch
      %116 = sbr.rel (%p113) target = $region28
    $region27: #{_forward.2} parent=5 // pred_region
      %s117 = ssub.s32 %s8, 1
      %p118 = scmp.lt.s32.totalorder %s13, 1
      %s119 = scalar_select %p118, %s13, 1
      %s120 = smul.addr %s119, 6
      %s121 = smul.addr %s120, 8
      %s122 = scalar_lea.vmem %s0, %s121
      %p123 = pneg %p34
      %p124 = pneg %p31
      %p125 = pneg %p55
      %p126 = pneg %p52
      %p127 = pneg %p81
      %p128 = pneg %p78
      %p129 = scmp.lt.s32.totalorder %s13, 1
      %s130 = scalar_select %p129, %s13, 1
      %s131 = smul.addr %s130, 4
      %s132 = scalar_lea.vmem %s2, %s131
      %p133 = scmp.lt.s32.totalorder %s13, 1
      %s134 = scalar_select %p133, %s13, 1
      %s135 = smul.addr %s134, 6
      %s136 = smul.addr %s135, 8
      %s137 = scalar_lea.vmem %s0, %s136
      %p138 = scmp.lt.s32.totalorder %s13, 1
      %s139 = scalar_select %p138, %s13, 1
      %s140 = smul.addr %s139, 4
      %s141 = scalar_lea.vmem %s2, %s140
      %v142 = vld [vmem:[%s137] sm:$0xff]
      %v143 = vld [vmem:[%s137 + $0x8] sm:$0xff]
      %v144 = vld [vmem:[%s137 + $0x10] sm:$0xff]
      %v145 = vld [vmem:[%s137 + $0x18] sm:$0xff]
      %v146 = vld [vmem:[%s137 + $0x20] sm:$0xff]
      %v147 = vld [vmem:[%s137 + $0x28] sm:$0xff]
      %v148 = vld [vmem:[%s1] sm:$0xff]
      %v149 = vld [vmem:[%s1 + $0x8] sm:$0xff]
      %v150 = vld [vmem:[%s1 + $0x10] sm:$0xff]
      %v151 = vld [vmem:[%s1 + $0x18] sm:$0xff]
      %v152 = vld [vmem:[%s1 + $0x20] sm:$0xff]
      %v153 = vld [vmem:[%s1 + $0x28] sm:$0xff]
      %v154 = vld [vmem:[%s1 + $0x30] sm:$0xff]
      %v155 = vld [vmem:[%s1 + $0x38] sm:$0xff]
      %v156 = vld [vmem:[%s1 + $0x40] sm:$0xff]
      %v157 = vld [vmem:[%s1 + $0x48] sm:$0xff]
      %v158 = vld [vmem:[%s1 + $0x50] sm:$0xff]
      %v159 = vld [vmem:[%s1 + $0x58] sm:$0xff]
      %v160 = vld [vmem:[%s1 + $0x60] sm:$0xff]
      %v161 = vld [vmem:[%s1 + $0x68] sm:$0xff]
      %v162 = vld [vmem:[%s1 + $0x70] sm:$0xff]
      %v163 = vld [vmem:[%s1 + $0x78] sm:$0xff]
      %v164 = vld [vmem:[%s1 + $0x80] sm:$0xff]
      %v165 = vld [vmem:[%s1 + $0x88] sm:$0xff]
      %v166 = vld [vmem:[%s1 + $0x90] sm:$0xff]
      %v167 = vld [vmem:[%s1 + $0x98] sm:$0xff]
      %v168 = vld [vmem:[%s1 + $0xa0] sm:$0xff]
      %v169 = vld [vmem:[%s1 + $0xa8] sm:$0xff]
      %v170 = vld [vmem:[%s1 + $0xb0] sm:$0xff]
      %v171 = vld [vmem:[%s1 + $0xb8] sm:$0xff]
      %v172 = vld [vmem:[%s1 + $0xc0] sm:$0xff]
      %v173 = vld [vmem:[%s1 + $0xc8] sm:$0xff]
      %v174 = vld [vmem:[%s1 + $0xd0] sm:$0xff]
      %v175 = vld [vmem:[%s1 + $0xd8] sm:$0xff]
      %v176 = vld [vmem:[%s1 + $0xe0] sm:$0xff]
      %v177 = vld [vmem:[%s1 + $0xe8] sm:$0xff]
      %v178 = vld [vmem:[%s1 + $0xf0] sm:$0xff]
      %v179 = vld [vmem:[%s1 + $0xf8] sm:$0xff]
      %180 = vmatprep.subr.mxu0 %v149
      %181 = vmatpush1.msra.mxu0 %v148
      %182 = vmatprep.subr.mxu0 %v151
      %183 = vmatpush1.msra.mxu0 %v150
      %184 = vmatprep.subr.mxu0 %v153
      %185 = vmatpush1.msra.mxu0 %v152
      %186 = vmatprep.subr.mxu0 %v155
      %187 = vmatpush1.msra.mxu0 %v154
      %188 = vmatprep.subr.mxu0 %v157
      %189 = vmatpush1.msra.mxu0 %v156
      %190 = vmatprep.subr.mxu0 %v159
      %191 = vmatpush1.msra.mxu0 %v158
      %192 = vmatprep.subr.mxu0 %v161
      %193 = vmatpush1.msra.mxu0 %v160
      %194 = vmatprep.subr.mxu0 %v163
      %195 = vmatpush1.msra.mxu0 %v162
      %196 = vmatprep.subr.mxu0 %v165
      %197 = vmatpush1.msra.mxu0 %v164
      %198 = vmatprep.subr.mxu0 %v167
      %199 = vmatpush1.msra.mxu0 %v166
      %200 = vmatprep.subr.mxu0 %v169
      %201 = vmatpush1.msra.mxu0 %v168
      %202 = vmatprep.subr.mxu0 %v171
      %203 = vmatpush1.msra.mxu0 %v170
      %204 = vmatprep.subr.mxu0 %v173
      %205 = vmatpush1.msra.mxu0 %v172
      %206 = vmatprep.subr.mxu0 %v175
      %207 = vmatpush1.msra.mxu0 %v174
      %208 = vmatprep.subr.mxu0 %v177
      %209 = vmatpush1.msra.mxu0 %v176
      %210 = vmatprep.subr.mxu0 %v179
      %211 = vmatpush1.msra.mxu0 %v178
      %212 = vmatprep.subr.mxu0 0.0
      %213 = vmatpush1.msra.mxu0 0.0
      %214 = vmatprep.subr.mxu0 0.0
      %215 = vmatpush1.msra.mxu0 0.0
      %216 = vmatprep.subr.mxu0 0.0
      %217 = vmatpush1.msra.mxu0 0.0
      %218 = vmatprep.subr.mxu0 0.0
      %219 = vmatpush1.msra.mxu0 0.0
      %220 = vmatprep.subr.mxu0 0.0
      %221 = vmatpush1.msra.mxu0 0.0
      %222 = vmatprep.subr.mxu0 0.0
      %223 = vmatpush1.msra.mxu0 0.0
      %224 = vmatprep.subr.mxu0 0.0
      %225 = vmatpush1.msra.mxu0 0.0
      %226 = vmatprep.subr.mxu0 0.0
      %227 = vmatpush1.msra.mxu0 0.0
      %228 = vmatprep.subr.mxu0 0.0
      %229 = vmatpush1.msra.mxu0 0.0
      %230 = vmatprep.subr.mxu0 0.0
      %231 = vmatpush1.msra.mxu0 0.0
      %232 = vmatprep.subr.mxu0 0.0
      %233 = vmatpush1.msra.mxu0 0.0
      %234 = vmatprep.subr.mxu0 0.0
      %235 = vmatpush1.msra.mxu0 0.0
      %236 = vmatprep.subr.mxu0 0.0
      %237 = vmatpush1.msra.mxu0 0.0
      %238 = vmatprep.subr.mxu0 0.0
      %239 = vmatpush1.msra.mxu0 0.0
      %240 = vmatprep.subr.mxu0 0.0
      %241 = vmatpush1.msra.mxu0 0.0
      %242 = vmatprep.subr.mxu0 0.0
      %243 = vmatpush1.msra.mxu0 0.0
      %244 = vmatprep.mubr.f32.mxu0 0.0
      %245 = vmatmul.mubr.f32.gmra.mrb[0].mxu0 %v142
      %v246 = vpop.f32.mrb[0].mxu0
      %v247 = vadd.f32 0.0, %v246
      %v248 = vpop.f32.mrb[0].mxu0
      %v249 = vadd.f32 0.0, %v248
      %250 = vmatprep.mubr.f32.mxu0 0.0
      %251 = vmatmul.mubr.f32.gmra.mrb[0].mxu0 %v143
      %v252 = vpop.f32.mrb[0].mxu0
      %v253 = vadd.f32 0.0, %v252
      %v254 = vpop.f32.mrb[0].mxu0
      %v255 = vadd.f32 0.0, %v254
      %256 = vmatprep.mubr.f32.mxu0 0.0
      %257 = vmatmul.mubr.f32.gmra.mrb[0].mxu0 %v144
      %v258 = vpop.f32.mrb[0].mxu0
      %v259 = vadd.f32 0.0, %v258
      %v260 = vpop.f32.mrb[0].mxu0
      %v261 = vadd.f32 0.0, %v260
      %262 = vmatprep.mubr.f32.mxu0 0.0
      %263 = vmatmul.mubr.f32.gmra.mrb[0].mxu0 %v145
      %v264 = vpop.f32.mrb[0].mxu0
      %v265 = vadd.f32 0.0, %v264
      %v266 = vpop.f32.mrb[0].mxu0
      %v267 = vadd.f32 0.0, %v266
      %268 = vmatprep.mubr.f32.mxu0 0.0
      %269 = vmatmul.mubr.f32.gmra.mrb[0].mxu0 %v146
      %v270 = vpop.f32.mrb[0].mxu0
      %v271 = vadd.f32 0.0, %v270
      %v272 = vpop.f32.mrb[0].mxu0
      %v273 = vadd.f32 0.0, %v272
      %274 = vmatprep.mubr.f32.mxu0 0.0
      %275 = vmatmul.mubr.f32.gmra.mrb[0].mxu0 %v147
      %v276 = vpop.f32.mrb[0].mxu0
      %v277 = vadd.f32 0.0, %v276
      %v278 = vpop.f32.mrb[0].mxu0
      %v279 = vadd.f32 0.0, %v278
      %280 = vdwg.mxu0
      %v281 = vmul.f32 %v247, %v247
      %v282 = vmul.f32 %v253, %v253
      %v283 = vmul.f32 %v259, %v259
      %v284 = vmul.f32 %v265, %v265
      %v285 = vmul.f32 %v271, %v271
      %v286 = vmul.f32 %v277, %v277
      %v287 = vmul.f32 %v249, %v249
      %v288 = vmul.f32 %v255, %v255
      %v289 = vmul.f32 %v261, %v261
      %v290 = vmul.f32 %v267, %v267
      %v291 = vmul.f32 %v273, %v273
      %v292 = vmul.f32 %v279, %v279
      %v293 = vadd.f32 %v281, %v287
      %v294 = vadd.f32 %v282, %v288
      %v295 = vadd.f32 %v283, %v289
      %v296 = vadd.f32 %v284, %v290
      %v297 = vadd.f32 %v285, %v291
      %v298 = vadd.f32 %v286, %v292
      %v299 = vadd.f32 %v293, 1e-16
      %v300 = vadd.f32 %v294, 1e-16
      %v301 = vadd.f32 %v295, 1e-16
      %v302 = vadd.f32 %v296, 1e-16
      %v303 = vadd.f32 %v297, 1e-16
      %v304 = vadd.f32 %v298, 1e-16
      %v305 = vlog2.pop %v299
      %v306 = vmul.f32 %v305, 0.6931472
      %v307 = vlog2.pop %v300
      %v308 = vmul.f32 %v307, 0.6931472
      %v309 = vlog2.pop %v301
      %v310 = vmul.f32 %v309, 0.6931472
      %v311 = vlog2.pop %v302
      %v312 = vmul.f32 %v311, 0.6931472
      %v313 = vlog2.pop %v303
      %v314 = vmul.f32 %v313, 0.6931472
      %v315 = vlog2.pop %v304
      %v316 = vmul.f32 %v315, 0.6931472
      %v317 = vmul.f32 %v306, 0.4342945
      %v318 = vmul.f32 %v308, 0.4342945
      %v319 = vmul.f32 %v310, 0.4342945
      %v320 = vmul.f32 %v312, 0.4342945
      %v321 = vmul.f32 %v314, 0.4342945
      %v322 = vmul.f32 %v316, 0.4342945
      %v323 = vmul.f32 %v317, 0.5
      %v324 = vmul.f32 %v318, 0.5
      %v325 = vmul.f32 %v319, 0.5
      %v326 = vmul.f32 %v320, 0.5
      %v327 = vmul.f32 %v321, 0.5
      %v328 = vmul.f32 %v322, 0.5
      %v329 = vsub.f32 %v323, %v326
      %v330 = vsub.f32 %v324, %v327
      %v331 = vsub.f32 %v325, %v328
      %v332 = vlaneseq
      %v333 = vshrl.u32 %v332, 7
      %v334 = vadd.s32 %v333, 8
      %v335 = vadd.s32 %v333, 16
      %vm336 = vcmp.lt.s32.totalorder %v333, 17
      %vm337 = vcmp.lt.s32.totalorder %v334, 17
      %vm338 = vcmp.lt.s32.totalorder %v335, 17
      %v339 = vmul.f32 %v326, %v326
      %v340 = vmul.f32 %v327, %v327
      %v341 = vmul.f32 %v328, %v328
      %v342 = vsel %vm336, %v339, 0.0
      %v343 = vsel %vm337, %v340, 0.0
      %v344 = vsel %vm338, %v341, 0.0
      %v345 = vand.u32 2147483647, %v329
      %v346 = vand.u32 2147483647, %v330
      %v347 = vand.u32 2147483647, %v331
      %v348 = vadd.f32 %v345, %v346
      %v349 = vadd.f32 %v348, %v347
      %v350 = vrot.slane %v349, 4
      %v351 = vadd.f32 %v349, %v350
      %v352 = vrot.slane %v351, 2
      %v353 = vadd.f32 %v351, %v352
      %v354 = vrot.slane %v353, 1
      %v355 = vadd.f32 %v353, %v354
      %v356 = vmul.f32 %v329, %v329
      %v357 = vmul.f32 %v330, %v330
      %v358 = vmul.f32 %v331, %v331
      %v359 = vadd.f32 %v356, %v357
      %v360 = vadd.f32 %v359, %v358
      %v361 = vrot.slane %v360, 4
      %v362 = vadd.f32 %v360, %v361
      %v363 = vrot.slane %v362, 2
      %v364 = vadd.f32 %v362, %v363
      %v365 = vrot.slane %v364, 1
      %v366 = vadd.f32 %v364, %v365
      %v367 = vadd.f32 %v342, %v343
      %v368 = vadd.f32 %v367, %v344
      %v369 = vrot.slane %v368, 4
      %v370 = vadd.f32 %v368, %v369
      %v371 = vrot.slane %v370, 2
      %v372 = vadd.f32 %v370, %v371
      %v373 = vrot.slane %v372, 1
      %v374 = vadd.f32 %v372, %v373
      %vm375 = vcmask 1040384
      %v376 = vsel %vm375, %v355, %v366
      %vm377 = vcmask 1041408
      %v378 = vsel %vm377, %v376, %v374
      %379 = vst [vmem:[%s141] sm:$0x7] %v378
      %p380 = scmp.lt.s32.totalorder %s13, 1
      %s381 = scalar_select %p380, %s13, 1
      %s382 = smul.addr %s381, 4
      %s383 = scalar_lea.vmem %s2, %s382
      // Predicated region
      $region29: #{_forward.2} parent=27 // pred_check
        %p384 = pneg %p78
      $region30: #{_forward.2} parent=27 // pred_check_branch
        %386 = sbr.rel (%p384) target = $region32
      $region31: #{_forward.2} parent=27 // pred_region
        _
      $region32: #{_forward.2} parent=27 // pred_fallthru
        _
    $region28: #{_forward.2} parent=5 // pred_fallthru
      _
    %p387 = scmp.le.s32.totalorder 2, %s8
    // Predicated region
    $region33: #{_forward.2} parent=5 // pred_check
      %p388 = pneg %p387
    $region34: #{_forward.2} parent=5 // pred_check_branch
      %390 = sbr.rel (%p388) target = $region36
    $region35: #{_forward.2} parent=5 // pred_region
      %s391 = ssub.s32 %s8, 2
      // Predicated region
      $region37: #{_forward.2} parent=35 // pred_check
        %p392 = pneg %p84
      $region38: #{_forward.2} parent=35 // pred_check_branch
        %394 = sbr.rel (%p392) target = $region40
      $region39: #{_forward.2} parent=35 // pred_region
        %p395 = scmp.lt.s32.totalorder %s14, 1
        %s396 = scalar_select %p395, %s14, 1
        %s397 = smul.addr %s396, 4
        %s398 = scalar_lea.vmem %s2, %s397
      $region40: #{_forward.2} parent=35 // pred_fallthru
        _
    $region36: #{_forward.2} parent=5 // pred_fallthru
      _
  $region6: #{_forward.2} parent=0 // loop_footer
    %s12 = sadd.s32 1, %s8
  $region7: #{_forward.2} parent=0 // loop_footer_branch
    %7 = sbr.rel target = $region3
  $region8: #{_forward.2} parent=0 // loop_exit
    _

</llo_original>
